<compile_context>
chip_gen: v6e
topology: v6e:2x2x1
jax: 0.10.0
libtpu: 0.0.40
codegen_flags: <defaults>
</compile_context>

<pallas_src>
import functools

import numpy as np
import jax
import jax.numpy as jnp
from jax.experimental import pallas as pl
from jax.experimental.pallas import tpu as pltpu


def _round_up(x, m):
    return ((x + m - 1) // m) * m


def _vmem_limit_bytes():
    """Generation-aware scoped-VMEM budget: physical capacity minus ~16 MiB
    headroom for Mosaic internal scratch / output buffers (=> ~48 MiB on a
    v7x TensorCore, ~112 MiB on v5e/v6e)."""
    cap = 128 * 1024 * 1024
    try:
        cap = int(getattr(pltpu.get_tpu_info(), "vmem_capacity_bytes", cap))
    except Exception:
        pass
    return int(max(32 * 1024 * 1024, cap - 16 * 1024 * 1024))


def _const_spec(shape, single_buffer):
    """BlockSpec for a grid-invariant operand.  Single-buffer it: its block
    index never changes, so a second pipeline buffer is pure VMEM waste."""
    index_map = lambda i: (0,) * len(shape)
    if single_buffer:
        try:
            return pl.BlockSpec(shape, index_map, pipeline_mode=pl.Buffered(1))
        except Exception:          # jax version without pipeline_mode/Buffered
            pass
    return pl.BlockSpec(shape, index_map)


# ----------------------------- Pallas kernel --------------------------------
def _l2sim_ce_kernel(h_ref, e_ref, cb_ref, t_ref, num_ref, den_ref, *, cc):
    """One row tile of the L2-similarity cross-entropy (Cp chunked in-kernel).

    h_ref  : (TM, Dp) bf16  row tile of flat hidden states
    e_ref  : (Cp, Dp) bf16  comparison embeddings pre-scaled by 2/temperature
                            (VMEM-resident across the whole grid, 1 buffer)
    cb_ref : (1, Cp)  f32   column bias = -|e|^2/temperature; padded cols -1e30
    t_ref  : (TM, 1)  i32   remapped target column per row, -1 for ignored rows
    num_ref/den_ref : (1, 128) f32  per-tile partial CE sum / valid-row count
    cc     : static chunk width along Cp (multiple of 128, divides Cp)
    """
    tm = h_ref.shape[0]
    cp = e_ref.shape[0]
    n_chunks = cp // cc

    h = h_ref[...]                                             # (TM, Dp) bf16
    t = t_ref[...]                                             # (TM, 1)  i32
    neg_big = jnp.float32(-1e30)

    def body(c, carry):
        m, l, tgt = carry
        off = pl.multiple_of(c * cc, cc)
        e_c = e_ref[pl.ds(off, cc), :]                         # (cc, Dp) bf16
        cb_c = cb_ref[:, pl.ds(off, cc)]                       # (1, cc)  f32
        # MXU matmul: bf16 operands, f32 accumulation (2/T folded into e).
        dots = jax.lax.dot_general(
            h, e_c, (((1,), (1,)), ((), ())),
            preferred_element_type=jnp.float32)                # (TM, cc)
        logits = dots + cb_c
        # Target logit via (1,cc) iota broadcast -- no (TM,cc) i32 temporary.
        col = jax.lax.broadcasted_iota(jnp.int32, (1, cc), 1) + off
        tgt_c = jnp.max(jnp.where(col == t, logits, neg_big),
                        axis=1, keepdims=True)                 # (TM, 1)
        tgt = jnp.maximum(tgt, tgt_c)
        # Online softmax update (padded columns underflow to 0 in exp).
        m_new = jnp.maximum(m, jnp.max(logits, axis=1, keepdims=True))
        l = l * jnp.exp(m - m_new) + jnp.sum(jnp.exp(logits - m_new),
                                             axis=1, keepdims=True)
        return m_new, l, tgt

    init = (jnp.full((tm, 1), neg_big, jnp.float32),
            jnp.zeros((tm, 1), jnp.float32),
            jnp.full((tm, 1), neg_big, jnp.float32))
    m, l, tgt = jax.lax.fori_loop(0, n_chunks, body, init,
                                  unroll=(n_chunks <= 8))

    rm = (t >= 0).astype(jnp.float32)                          # valid-row mask
    lse = m + jnp.log(l)
    per_row = (lse - tgt) * rm                                 # masked CE/row
    num = jnp.sum(per_row, axis=0, keepdims=True)              # (1, 1)
    den = jnp.sum(rm, axis=0, keepdims=True)                   # (1, 1)
    num_ref[...] = jnp.broadcast_to(num, num_ref.shape)        # lane-dense
    den_ref[...] = jnp.broadcast_to(den, den_ref.shape)


# ------------------------- jitted device wrapper -----------------------------
@functools.partial(jax.jit, static_argnames=("tm", "cc", "single_buffer"))
def _l2sim_loss_impl(hidden_states, lookup_weight, all_indices_padded,
                     num_compare, targets_flat, temperature, *, tm, cc,
                     single_buffer):
    assert tm % 16 == 0, "row tile must be a multiple of 16 for bf16 tiling"
    assert cc % 128 == 0, "Cp chunk must be a multiple of 128 lanes"
    b, s, d = hidden_states.shape
    n0 = b * s
    cp = all_indices_padded.shape[0]
    assert cp % 128 == 0
    dp = _round_up(max(d, 128), 128)
    npad = _round_up(max(n0, tm), tm)
    g = npad // tm

    # Largest multiple-of-128 chunk that divides cp and is <= cc: bounds the
    # (TM,cc) temporaries without padded matmul work.
    cc_eff = min(cc, cp)
    while cp % cc_eff:
        cc_eff -= 128

    f32 = jnp.float32
    inv_t = 1.0 / jnp.asarray(temperature, f32)

    # Gather comparison embeddings on device; padded indices gather row 0 but
    # are masked out of the softmax via the column bias below.
    comp = lookup_weight[all_indices_padded].astype(f32)              # (cp, d)
    en = jnp.sum(comp * comp, axis=1)                                 # (cp,)
    col_valid = jnp.arange(cp, dtype=jnp.int32) < num_compare
    col_bias = jnp.where(col_valid, -en * inv_t, f32(-1e30)).reshape(1, cp)

    # Fold the 2/temperature logit scale into the bf16 matmul operand.
    e_scaled = (comp * (2.0 * inv_t)).astype(jnp.bfloat16)
    if d == dp:
        e_pad = e_scaled
    else:
        e_pad = jnp.zeros((cp, dp), jnp.bfloat16).at[:, :d].set(e_scaled)

    flat_h = hidden_states.reshape(n0, d).astype(jnp.bfloat16)
    if n0 == npad and d == dp:
        h_pad = flat_h            # aligned production shapes: no extra HBM pass
    else:
        h_pad = jnp.zeros((npad, dp), jnp.bfloat16).at[:n0, :d].set(flat_h)

    # Row mask folded into the target stream: ignored / padded rows get -1.
    t_pad = jnp.full((npad, 1), -1, jnp.int32).at[:n0, 0].set(
        targets_flat.astype(jnp.int32))

    kernel = functools.partial(_l2sim_ce_kernel, cc=cc_eff)
    num_p, den_p = pl.pallas_call(
        kernel,
        out_shape=(jax.ShapeDtypeStruct((1, g * 128), f32),
                   jax.ShapeDtypeStruct((1, g * 128), f32)),
        grid=(g,),
        in_specs=[
            pl.BlockSpec((tm, dp), lambda i: (i, 0)),   # h row tile (pipelined)
            _const_spec((cp, dp), single_buffer),       # e slab (resident)
            _const_spec((1, cp), single_buffer),        # column bias (resident)
            pl.BlockSpec((tm, 1), lambda i: (i, 0)),    # targets (+row mask)
        ],
        out_specs=(pl.BlockSpec((1, 128), lambda i: (0, i)),
                   pl.BlockSpec((1, 128), lambda i: (0, i))),
        compiler_params=pltpu.CompilerParams(
            dimension_semantics=("parallel",),          # v7x: split row tiles
            vmem_limit_bytes=_vmem_limit_bytes()),
    )(h_pad, e_pad, col_bias, t_pad)

    num = jnp.sum(num_p.reshape(g, 128)[:, 0])
    den = jnp.sum(den_p.reshape(g, 128)[:, 0])
    return num / jnp.maximum(den, f32(1.0))                 # guarded mean


def l2sim_loss(hidden_states, lookup_weight, all_indices_padded, num_compare,
               targets_flat, temperature, *, tm=256, cc=512):
    """Public entry point.  Use tm as a multiple of 256 in production (MXU is
    2x256^2 on v6e/v7x); the demo uses a tiny tm only to exercise the grid.
    Falls back to double-buffered invariant operands if this jax build rejects
    pl.Buffered(1)."""
    args = (hidden_states, lookup_weight, all_indices_padded, num_compare,
            targets_flat, temperature)
    try:
        return _l2sim_loss_impl(*args, tm=tm, cc=cc, single_buffer=True)
    except Exception:
        return _l2sim_loss_impl(*args, tm=tm, cc=cc, single_buffer=False)


# --------------------------- host-side glue ----------------------------------
# TODO(synk): torch.unique / randperm negative sampling / nonzero are
# dynamic-shape ops with no clean Pallas equivalent; they are reproduced
# host-side (numpy + jax.random).  Only tiny index vectors cross H2D; the big
# slabs are built on device inside l2sim_loss.
def prepare_comparison_set(vocab_size, target_indices, ignore_index,
                           total_compare_tokens, sample_key):
    flat_targets = np.asarray(target_indices).reshape(-1)
    keep = flat_targets != ignore_index
    kept_targets = flat_targets[keep]

    unique_targets = np.unique(kept_targets)            # sorted, like torch.unique
    num_batch_uniques = unique_targets.shape[0]
    num_extra_samples = max(0, total_compare_tokens - num_batch_uniques)

    sampling_mask = np.ones(vocab_size, dtype=bool)
    sampling_mask[unique_targets] = False
    valid_indices = np.nonzero(sampling_mask)[0]

    if num_extra_samples > 0 and len(valid_indices) > 0:
        perm = np.asarray(jax.random.permutation(sample_key, len(valid_indices)))
        num_to_sample = min(num_extra_samples, len(valid_indices))
        extra = valid_indices[perm[:num_to_sample]]
    else:
        extra = np.array([], dtype=np.int64)

    all_indices = np.concatenate(
        [unique_targets.astype(np.int64), extra.astype(np.int64)])
    num_compare = len(all_indices)

    indices_map = np.zeros(vocab_size, dtype=np.int64)
    indices_map[all_indices] = np.arange(num_compare)
    safe_t = np.where(keep, flat_targets, 0)
    remapped = np.where(keep, indices_map[safe_t], -1)   # -1 marks ignored rows

    cp = _round_up(max(num_compare, 128), 128)           # TODO(synk): bucket Cp
    all_idx_padded = np.zeros((cp,), np.int32)
    all_idx_padded[:num_compare] = all_indices

    return (jnp.asarray(all_idx_padded),
            jnp.asarray(num_compare, jnp.int32),
            jnp.asarray(remapped.astype(np.int32)))


# ------------------------------ reference ------------------------------------
def _reference_loss(hidden_states, lookup_weight, target_indices,
                    all_indices_padded, num_compare, ignore_index, temperature):
    hid = np.asarray(hidden_states, np.float64)
    w = np.asarray(lookup_weight, np.float64)
    tgt = np.asarray(target_indices).reshape(-1)
    d = hid.shape[-1]
    flat_h = hid.reshape(-1, d)
    keep = tgt != ignore_index
    flat_h = flat_h[keep]
    kept_t = tgt[keep]
    nc = int(num_compare)
    idx = np.asarray(all_indices_padded)[:nc]
    comp = w[idx]
    imap = np.zeros(w.shape[0], dtype=np.int64)
    imap[idx] = np.arange(nc)
    t = imap[kept_t]
    hn = np.sum(flat_h ** 2, axis=1, keepdims=True)
    en = np.sum(comp ** 2, axis=1, keepdims=True).T
    dots = flat_h @ comp.T
    logits = -(hn + en - 2.0 * dots) / float(temperature)
    m = logits.max(axis=1, keepdims=True)
    lse = m + np.log(np.exp(logits - m).sum(axis=1, keepdims=True))
    tl = logits[np.arange(len(t)), t][:, None]
    return float(np.mean(lse - tl))


if __name__ == "__main__":
    key = jax.random.PRNGKey(0)
    k_emb, k_hid, k_tgt, k_ign, k_perm = jax.random.split(key, 5)

    B, S, D = 2, 16, 32          # batch, seq, hidden_dim
    V = 64                       # vocab_size
    ignore_index = -100
    total_compare_tokens = 32
    temperature = jnp.float32(0.1)   # runtime scalar (model.temperature stand-in)

    lookup_weight = jax.random.normal(k_emb, (V, D), dtype=jnp.float32) * 0.5
    hidden_states = jax.random.normal(k_hid, (B, S, D), dtype=jnp.float32)
    target_indices = jax.random.randint(k_tgt, (B, S), 0, V)
    ignore = jax.random.bernoulli(k_ign, 0.2, (B, S))
    target_indices = jnp.where(ignore, ignore_index, target_indices)

    all_idx, num_compare, targets_flat = prepare_comparison_set(
        V, target_indices, ignore_index, total_compare_tokens, k_perm)

    # small tm (multiple of 16 for bf16 sublane packing) so the demo exercises
    # a multi-step grid; production default is tm=256, cc=512.
    loss = l2sim_loss(hidden_states, lookup_weight, all_idx, num_compare,
                      targets_flat, temperature, tm=16, cc=128)
    loss = jax.block_until_ready(loss)

    ref = _reference_loss(hidden_states, lookup_weight, target_indices,
                          all_idx, num_compare, ignore_index, float(temperature))
    np.testing.assert_allclose(float(loss), ref, rtol=3e-2, atol=1e-1)
    print("KERNEL_OK")
</pallas_src>

<mosaic_0001>
module attributes {stable_mosaic.version = 11 : i64} {
  func.func @_l2sim_ce_kernel(%arg0: i32, %arg1: memref<16x128xbf16, #tpu.memory_space<vmem>>, %arg2: memref<128x128xbf16, #tpu.memory_space<vmem>>, %arg3: memref<1x128xf32, #tpu.memory_space<vmem>>, %arg4: memref<16x1xi32, #tpu.memory_space<vmem>>, %arg5: memref<1x128xf32, #tpu.memory_space<vmem>>, %arg6: memref<1x128xf32, #tpu.memory_space<vmem>>) attributes {dimension_semantics = [#tpu.dimension_semantics<parallel>], iteration_bounds = array<i64: 2>, scalar_prefetch = 0 : i64, scratch_operands = 0 : i64, tpu.core_type = #tpu.core_type<tc>, window_params = [{transform_indices = @transform_0, window_bounds = array<i64: 16, 128>}, {pipeline_mode = #tpu.pipeline_mode<synchronous>, transform_indices = @transform_1, window_bounds = array<i64: 128, 128>}, {pipeline_mode = #tpu.pipeline_mode<synchronous>, transform_indices = @transform_2, window_bounds = array<i64: 1, 128>}, {transform_indices = @transform_3, window_bounds = array<i64: 16, 1>}, {transform_indices = @transform_4, window_bounds = array<i64: 1, 128>}, {transform_indices = @transform_5, window_bounds = array<i64: 1, 128>}]} {
    %c0 = arith.constant 0 : index
    %c0_0 = arith.constant 0 : index
    %0 = vector.load %arg1[%c0, %c0_0] : memref<16x128xbf16, #tpu.memory_space<vmem>>, vector<16x128xbf16>
    %c0_1 = arith.constant 0 : index
    %c0_2 = arith.constant 0 : index
    %1 = vector.load %arg4[%c0_1, %c0_2] : memref<16x1xi32, #tpu.memory_space<vmem>>, vector<16x1xi32>
    %cst = arith.constant -1.000000e+30 : f32
    %2 = vector.broadcast %cst : f32 to vector<16x1xf32>
    %cst_3 = arith.constant 0.000000e+00 : f32
    %3 = vector.broadcast %cst_3 : f32 to vector<16x1xf32>
    %cst_4 = arith.constant -1.000000e+30 : f32
    %4 = vector.broadcast %cst_4 : f32 to vector<16x1xf32>
    %cst_5 = arith.constant -1.000000e+30 : f32
    %c0_i32 = arith.constant 0 : i32
    %c128_i32 = arith.constant 128 : i32
    %5 = arith.muli %c0_i32, %c128_i32 : i32
    %6 = tpu.assume_multiple %5, 128 : i32
    %7 = arith.index_cast %6 : i32 to index
    %c0_6 = arith.constant 0 : index
    %8 = vector.load %arg2[%7, %c0_6] : memref<128x128xbf16, #tpu.memory_space<vmem>>, vector<128x128xbf16>
    %c0_7 = arith.constant 0 : index
    %9 = arith.index_cast %6 : i32 to index
    %10 = vector.load %arg3[%c0_7, %9] : memref<1x128xf32, #tpu.memory_space<vmem>>, vector<1x128xf32>
    %cst_8 = arith.constant dense<0.000000e+00> : vector<16x128xf32>
    %11 = tpu.matmul %0, %8, %cst_8 {dimension_numbers = #tpu.dot_dimension_numbers<[1], [1], [0], [0], [0, 0, 1, 0], [], []>} : vector<16x128xbf16>, vector<128x128xbf16>, vector<16x128xf32> -> vector<16x128xf32>
    %12 = vector.broadcast %10 : vector<1x128xf32> to vector<16x128xf32>
    %13 = arith.addf %11, %12 : vector<16x128xf32>
    %14 = tpu.iota {dimensions = array<i32: 1>} : vector<1x128xi32>
    %15 = vector.broadcast %6 : i32 to vector<1x128xi32>
    %16 = arith.addi %14, %15 : vector<1x128xi32>
    %17 = vector.broadcast %16 : vector<1x128xi32> to vector<16x128xi32>
    %18 = vector.broadcast %1 : vector<16x1xi32> to vector<16x128xi32>
    %19 = arith.cmpi eq, %17, %18 : vector<16x128xi32>
    %20 = vector.broadcast %cst_5 : f32 to vector<16x128xf32>
    %21 = arith.select %19, %13, %20 : vector<16x128xi1>, vector<16x128xf32>
    %cst_9 = arith.constant dense<0xFF800000> : vector<16xf32>
    %22 = vector.multi_reduction <maximumf>, %21, %cst_9 [1] : vector<16x128xf32> to vector<16xf32>
    %23 = vector.shape_cast %22 : vector<16xf32> to vector<16x1xf32>
    %24 = arith.maximumf %4, %23 : vector<16x1xf32>
    %cst_10 = arith.constant dense<0xFF800000> : vector<16xf32>
    %25 = vector.multi_reduction <maximumf>, %13, %cst_10 [1] : vector<16x128xf32> to vector<16xf32>
    %26 = vector.shape_cast %25 : vector<16xf32> to vector<16x1xf32>
    %27 = arith.maximumf %2, %26 : vector<16x1xf32>
    %28 = arith.subf %2, %27 : vector<16x1xf32>
    %29 = math.exp %28 : vector<16x1xf32>
    %30 = arith.mulf %3, %29 : vector<16x1xf32>
    %31 = vector.broadcast %27 : vector<16x1xf32> to vector<16x128xf32>
    %32 = arith.subf %13, %31 : vector<16x128xf32>
    %33 = math.exp %32 : vector<16x128xf32>
    %cst_11 = arith.constant dense<0.000000e+00> : vector<16xf32>
    %34 = vector.multi_reduction <add>, %33, %cst_11 [1] : vector<16x128xf32> to vector<16xf32>
    %35 = vector.shape_cast %34 : vector<16xf32> to vector<16x1xf32>
    %36 = arith.addf %30, %35 : vector<16x1xf32>
    %c1_i32 = arith.constant 1 : i32
    %c0_i32_12 = arith.constant 0 : i32
    %37 = vector.broadcast %c0_i32_12 : i32 to vector<16x1xi32>
    %38 = arith.cmpi sge, %1, %37 : vector<16x1xi32>
    %39 = arith.extui %38 : vector<16x1xi1> to vector<16x1xi32>
    %40 = arith.sitofp %39 : vector<16x1xi32> to vector<16x1xf32>
    %41 = math.log %36 : vector<16x1xf32>
    %42 = arith.addf %27, %41 : vector<16x1xf32>
    %43 = arith.subf %42, %24 : vector<16x1xf32>
    %44 = arith.mulf %43, %40 : vector<16x1xf32>
    %cst_13 = arith.constant dense<0.000000e+00> : vector<1xf32>
    %45 = vector.multi_reduction <add>, %44, %cst_13 [0] : vector<16x1xf32> to vector<1xf32>
    %46 = vector.shape_cast %45 : vector<1xf32> to vector<1x1xf32>
    %cst_14 = arith.constant dense<0.000000e+00> : vector<1xf32>
    %47 = vector.multi_reduction <add>, %40, %cst_14 [0] : vector<16x1xf32> to vector<1xf32>
    %48 = vector.shape_cast %47 : vector<1xf32> to vector<1x1xf32>
    %49 = vector.shape_cast %46 : vector<1x1xf32> to vector<1x1xf32>
    %50 = vector.broadcast %49 : vector<1x1xf32> to vector<1x128xf32>
    %c0_15 = arith.constant 0 : index
    %c0_16 = arith.constant 0 : index
    %51 = vector.load %arg5[%c0_15, %c0_16] : memref<1x128xf32, #tpu.memory_space<vmem>>, vector<1x128xf32>
    tpu.vector_store %arg5[%c0_15, %c0_16], %50 {strides = array<i32>} : memref<1x128xf32, #tpu.memory_space<vmem>>, vector<1x128xf32>,
    %52 = vector.shape_cast %48 : vector<1x1xf32> to vector<1x1xf32>
    %53 = vector.broadcast %52 : vector<1x1xf32> to vector<1x128xf32>
    %c0_17 = arith.constant 0 : index
    %c0_18 = arith.constant 0 : index
    %54 = vector.load %arg6[%c0_17, %c0_18] : memref<1x128xf32, #tpu.memory_space<vmem>>, vector<1x128xf32>
    tpu.vector_store %arg6[%c0_17, %c0_18], %53 {strides = array<i32>} : memref<1x128xf32, #tpu.memory_space<vmem>>, vector<1x128xf32>,
    return
  }
  func.func @transform_0(%arg0: i32) -> (i32, i32) {
    %c0_i32 = arith.constant 0 : i32
    %c0_i32_0 = arith.constant 0 : i32
    return %arg0, %c0_i32 : i32, i32
  }
  func.func @transform_1(%arg0: i32) -> (i32, i32) {
    %c0_i32 = arith.constant 0 : i32
    %c0_i32_0 = arith.constant 0 : i32
    %c0_i32_1 = arith.constant 0 : i32
    return %c0_i32, %c0_i32_0 : i32, i32
  }
  func.func @transform_2(%arg0: i32) -> (i32, i32) {
    %c0_i32 = arith.constant 0 : i32
    %c0_i32_0 = arith.constant 0 : i32
    %c0_i32_1 = arith.constant 0 : i32
    return %c0_i32, %c0_i32_0 : i32, i32
  }
  func.func @transform_3(%arg0: i32) -> (i32, i32) {
    %c0_i32 = arith.constant 0 : i32
    %c0_i32_0 = arith.constant 0 : i32
    return %arg0, %c0_i32 : i32, i32
  }
  func.func @transform_4(%arg0: i32) -> (i32, i32) {
    %c0_i32 = arith.constant 0 : i32
    %c0_i32_0 = arith.constant 0 : i32
    return %c0_i32, %arg0 : i32, i32
  }
  func.func @transform_5(%arg0: i32) -> (i32, i32) {
    %c0_i32 = arith.constant 0 : i32
    %c0_i32_0 = arith.constant 0 : i32
    return %c0_i32, %arg0 : i32, i32
  }
}

module attributes {stable_mosaic.version = 11 : i64} {
  func.func @_l2sim_ce_kernel(%arg0: i32, %arg1: memref<16x128xbf16, #tpu.memory_space<vmem>>, %arg2: memref<128x128xbf16, #tpu.memory_space<vmem>>, %arg3: memref<1x128xf32, #tpu.memory_space<vmem>>, %arg4: memref<16x1xi32, #tpu.memory_space<vmem>>, %arg5: memref<1x128xf32, #tpu.memory_space<vmem>>, %arg6: memref<1x128xf32, #tpu.memory_space<vmem>>) attributes {dimension_semantics = [#tpu.dimension_semantics<parallel>], iteration_bounds = array<i64: 2>, scalar_prefetch = 0 : i64, scratch_operands = 0 : i64, tpu.core_type = #tpu.core_type<tc>, window_params = [{transform_indices = @transform_0, window_bounds = array<i64: 16, 128>}, {pipeline_mode = #tpu.pipeline_mode<synchronous>, transform_indices = @transform_1, window_bounds = array<i64: 128, 128>}, {pipeline_mode = #tpu.pipeline_mode<synchronous>, transform_indices = @transform_2, window_bounds = array<i64: 1, 128>}, {transform_indices = @transform_3, window_bounds = array<i64: 16, 1>}, {transform_indices = @transform_4, window_bounds = array<i64: 1, 128>}, {transform_indices = @transform_5, window_bounds = array<i64: 1, 128>}]} {
    %c0 = arith.constant 0 : index
    %c0_0 = arith.constant 0 : index
    %0 = vector.load %arg1[%c0, %c0_0] : memref<16x128xbf16, #tpu.memory_space<vmem>>, vector<16x128xbf16>
    %c0_1 = arith.constant 0 : index
    %c0_2 = arith.constant 0 : index
    %1 = vector.load %arg4[%c0_1, %c0_2] : memref<16x1xi32, #tpu.memory_space<vmem>>, vector<16x1xi32>
    %cst = arith.constant -1.000000e+30 : f32
    %2 = vector.broadcast %cst : f32 to vector<16x1xf32>
    %cst_3 = arith.constant 0.000000e+00 : f32
    %3 = vector.broadcast %cst_3 : f32 to vector<16x1xf32>
    %cst_4 = arith.constant -1.000000e+30 : f32
    %4 = vector.broadcast %cst_4 : f32 to vector<16x1xf32>
    %cst_5 = arith.constant -1.000000e+30 : f32
    %c0_i32 = arith.constant 0 : i32
    %c128_i32 = arith.constant 128 : i32
    %5 = arith.muli %c0_i32, %c128_i32 : i32
    %6 = tpu.assume_multiple %5, 128 : i32
    %7 = arith.index_cast %6 : i32 to index
    %c0_6 = arith.constant 0 : index
    %8 = vector.load %arg2[%7, %c0_6] : memref<128x128xbf16, #tpu.memory_space<vmem>>, vector<128x128xbf16>
    %c0_7 = arith.constant 0 : index
    %9 = arith.index_cast %6 : i32 to index
    %10 = vector.load %arg3[%c0_7, %9] : memref<1x128xf32, #tpu.memory_space<vmem>>, vector<1x128xf32>
    %cst_8 = arith.constant dense<0.000000e+00> : vector<16x128xf32>
    %11 = tpu.matmul %0, %8, %cst_8 {dimension_numbers = #tpu.dot_dimension_numbers<[1], [1], [0], [0], [0, 0, 1, 0], [], []>} : vector<16x128xbf16>, vector<128x128xbf16>, vector<16x128xf32> -> vector<16x128xf32>
    %12 = vector.broadcast %10 : vector<1x128xf32> to vector<16x128xf32>
    %13 = arith.addf %11, %12 : vector<16x128xf32>
    %14 = tpu.iota {dimensions = array<i32: 1>} : vector<1x128xi32>
    %15 = vector.broadcast %6 : i32 to vector<1x128xi32>
    %16 = arith.addi %14, %15 : vector<1x128xi32>
    %17 = vector.broadcast %16 : vector<1x128xi32> to vector<16x128xi32>
    %18 = vector.broadcast %1 : vector<16x1xi32> to vector<16x128xi32>
    %19 = arith.cmpi eq, %17, %18 : vector<16x128xi32>
    %20 = vector.broadcast %cst_5 : f32 to vector<16x128xf32>
    %21 = arith.select %19, %13, %20 : vector<16x128xi1>, vector<16x128xf32>
    %cst_9 = arith.constant dense<0xFF800000> : vector<16xf32>
    %22 = vector.multi_reduction <maximumf>, %21, %cst_9 [1] : vector<16x128xf32> to vector<16xf32>
    %23 = vector.shape_cast %22 : vector<16xf32> to vector<16x1xf32>
    %24 = arith.maximumf %4, %23 : vector<16x1xf32>
    %cst_10 = arith.constant dense<0xFF800000> : vector<16xf32>
    %25 = vector.multi_reduction <maximumf>, %13, %cst_10 [1] : vector<16x128xf32> to vector<16xf32>
    %26 = vector.shape_cast %25 : vector<16xf32> to vector<16x1xf32>
    %27 = arith.maximumf %2, %26 : vector<16x1xf32>
    %28 = arith.subf %2, %27 : vector<16x1xf32>
    %29 = math.exp %28 : vector<16x1xf32>
    %30 = arith.mulf %3, %29 : vector<16x1xf32>
    %31 = vector.broadcast %27 : vector<16x1xf32> to vector<16x128xf32>
    %32 = arith.subf %13, %31 : vector<16x128xf32>
    %33 = math.exp %32 : vector<16x128xf32>
    %cst_11 = arith.constant dense<0.000000e+00> : vector<16xf32>
    %34 = vector.multi_reduction <add>, %33, %cst_11 [1] : vector<16x128xf32> to vector<16xf32>
    %35 = vector.shape_cast %34 : vector<16xf32> to vector<16x1xf32>
    %36 = arith.addf %30, %35 : vector<16x1xf32>
    %c1_i32 = arith.constant 1 : i32
    %c0_i32_12 = arith.constant 0 : i32
    %37 = vector.broadcast %c0_i32_12 : i32 to vector<16x1xi32>
    %38 = arith.cmpi sge, %1, %37 : vector<16x1xi32>
    %39 = arith.extui %38 : vector<16x1xi1> to vector<16x1xi32>
    %40 = arith.sitofp %39 : vector<16x1xi32> to vector<16x1xf32>
    %41 = math.log %36 : vector<16x1xf32>
    %42 = arith.addf %27, %41 : vector<16x1xf32>
    %43 = arith.subf %42, %24 : vector<16x1xf32>
    %44 = arith.mulf %43, %40 : vector<16x1xf32>
    %cst_13 = arith.constant dense<0.000000e+00> : vector<1xf32>
    %45 = vector.multi_reduction <add>, %44, %cst_13 [0] : vector<16x1xf32> to vector<1xf32>
    %46 = vector.shape_cast %45 : vector<1xf32> to vector<1x1xf32>
    %cst_14 = arith.constant dense<0.000000e+00> : vector<1xf32>
    %47 = vector.multi_reduction <add>, %40, %cst_14 [0] : vector<16x1xf32> to vector<1xf32>
    %48 = vector.shape_cast %47 : vector<1xf32> to vector<1x1xf32>
    %49 = vector.shape_cast %46 : vector<1x1xf32> to vector<1x1xf32>
    %50 = vector.broadcast %49 : vector<1x1xf32> to vector<1x128xf32>
    %c0_15 = arith.constant 0 : index
    %c0_16 = arith.constant 0 : index
    %51 = vector.load %arg5[%c0_15, %c0_16] : memref<1x128xf32, #tpu.memory_space<vmem>>, vector<1x128xf32>
    tpu.vector_store %arg5[%c0_15, %c0_16], %50 {strides = array<i32>} : memref<1x128xf32, #tpu.memory_space<vmem>>, vector<1x128xf32>,
    %52 = vector.shape_cast %48 : vector<1x1xf32> to vector<1x1xf32>
    %53 = vector.broadcast %52 : vector<1x1xf32> to vector<1x128xf32>
    %c0_17 = arith.constant 0 : index
    %c0_18 = arith.constant 0 : index
    %54 = vector.load %arg6[%c0_17, %c0_18] : memref<1x128xf32, #tpu.memory_space<vmem>>, vector<1x128xf32>
    tpu.vector_store %arg6[%c0_17, %c0_18], %53 {strides = array<i32>} : memref<1x128xf32, #tpu.memory_space<vmem>>, vector<1x128xf32>,
    return
  }
  func.func @transform_0(%arg0: i32) -> (i32, i32) {
    %c0_i32 = arith.constant 0 : i32
    %c0_i32_0 = arith.constant 0 : i32
    return %arg0, %c0_i32 : i32, i32
  }
  func.func @transform_1(%arg0: i32) -> (i32, i32) {
    %c0_i32 = arith.constant 0 : i32
    %c0_i32_0 = arith.constant 0 : i32
    %c0_i32_1 = arith.constant 0 : i32
    return %c0_i32, %c0_i32_0 : i32, i32
  }
  func.func @transform_2(%arg0: i32) -> (i32, i32) {
    %c0_i32 = arith.constant 0 : i32
    %c0_i32_0 = arith.constant 0 : i32
    %c0_i32_1 = arith.constant 0 : i32
    return %c0_i32, %c0_i32_0 : i32, i32
  }
  func.func @transform_3(%arg0: i32) -> (i32, i32) {
    %c0_i32 = arith.constant 0 : i32
    %c0_i32_0 = arith.constant 0 : i32
    return %arg0, %c0_i32 : i32, i32
  }
  func.func @transform_4(%arg0: i32) -> (i32, i32) {
    %c0_i32 = arith.constant 0 : i32
    %c0_i32_0 = arith.constant 0 : i32
    return %c0_i32, %arg0 : i32, i32
  }
  func.func @transform_5(%arg0: i32) -> (i32, i32) {
    %c0_i32 = arith.constant 0 : i32
    %c0_i32_0 = arith.constant 0 : i32
    return %c0_i32, %arg0 : i32, i32
  }
}

</mosaic_0001>

<llo_original>
// kernel: _l2sim_loss_impl.1
$region0: #{_l2sim_loss_impl.1}
  #allocation0 [shape = 'u32[]', space=smem, size = 0x4, offset = 0x4, fixed_abs, tag = 'smem constant byte address 0x4 - core index']
  #allocation1 [shape = 'u32[144,128]{1,0:T(1,128)}', space=vmem, size = 0x12000, scoped, tag = 'internal scratch']
  %s0 = inlined_call_operand.vmem [shape: bf16[32,128], index: 0, kind: input, shape index: {}]
  %s1 = inlined_call_operand.vmem [shape: bf16[128,128], index: 1, kind: input, shape index: {}]
  %s2 = inlined_call_operand.vmem [shape: f32[1,128], index: 2, kind: input, shape index: {}]
  %s3 = inlined_call_operand.vmem [shape: s32[32,1], index: 3, kind: input, shape index: {}]
  %s4 = inlined_call_operand.vmem [shape: f32[1,256], index: 4, kind: output, shape index: {0}]
  %s5 = inlined_call_operand.vmem [shape: f32[1,256], index: 5, kind: output, shape index: {1}]
  %6 = xla_tuple %s4, %s5
  %s7 = sld [smem:[#allocation0]]
  $region57: #{_l2sim_loss_impl.1} parent=0
    _
  %s9 = ssub.s32 1, %s7
  %s10 = scalar_select 0, %s9, %s7
  loop: start=0, step=1, limit=4
  $region2: #{_l2sim_loss_impl.1} parent=0 // loop_pre_header
    _
  $region3: #{_l2sim_loss_impl.1} parent=0 // loop_header
    %s12 = sphi 0, %s16
    %p13 = scmp.ge.s32.totalorder %s12, 4
    %s22 = sphi 0, %s24
    %s25 = sphi 0, %s22
    %s26 = sphi 0, %s25
    %s42 = sphi 0, %s26
    %s46 = sphi 0, %s46
    %s48 = sphi 0, %s46
    %s49 = sphi 0, %s48
    %s63 = sphi 0, %s49
    %s67 = sphi 0, %s67
    %s69 = sphi 0, %s67
    %s70 = sphi 0, %s69
    %s84 = sphi 0, %s70
    %s90 = sphi 0, %s92
    %s93 = sphi 0, %s90
    %s94 = sphi 0, %s93
    %s110 = sphi 0, %s94
    %s116 = sphi 0, %s118
    %s119 = sphi 0, %s116
    %s120 = sphi 0, %s119
    %s136 = sphi 0, %s120
    %s142 = sphi 0, %s144
    %s145 = sphi 0, %s142
    %s146 = sphi 0, %s145
    %s162 = sphi 0, %s146
  $region4: #{_l2sim_loss_impl.1} parent=0 // loop_header_branch
    %15 = sbr.rel (%p13) target = $region8
  $region5: #{_l2sim_loss_impl.1} parent=0 // loop_body
    %s17 = ssub.s32 %s12, 1
    %s18 = ssub.s32 %s12, 2
    %s19 = sadd.s32 %s12, 1
    %s20 = ssub.s32 %s12, %s19
    %p21 = scmp.eq.s32.totalorder %s20, 0
    %s23 = sadd.s32 %s22, 1
    %s24 = scalar_select %p21, %s22, %s23
    %p27 = pneg %p21
    %p28 = scmp.eq.s32.totalorder %s12, 1
    %p29 = por %p27, %p28
    %p30 = scmp.ne.s32.totalorder %s22, %s25
    %p31 = scmp.eq.s32.totalorder %s12, 0
    %p32 = por %p30, %p31
    %p33 = scmp.ne.s32.totalorder %s22, %s25
    %p34 = scmp.eq.s32.totalorder %s17, 1
    %p35 = por %p33, %p34
    %p36 = scmp.ne.s32.totalorder %s25, %s26
    %p37 = scmp.eq.s32.totalorder %s17, 0
    %p38 = por %p36, %p37
    %p39 = scmp.ne.s32.totalorder %s25, %s26
    %p40 = scmp.eq.s32.totalorder %s18, 1
    %p41 = por %p39, %p40
    %p43 = scmp.ne.s32.totalorder %s26, %s42
    %p44 = scmp.eq.s32.totalorder %s18, 0
    %p45 = por %p43, %p44
    %s47 = sadd.s32 %s46, 1
    %p50 = scmp.eq.s32.totalorder %s12, 1
    %p51 = scmp.ne.s32.totalorder %s46, %s48
    %p52 = scmp.eq.s32.totalorder %s12, 0
    %p53 = por %p51, %p52
    %p54 = scmp.ne.s32.totalorder %s46, %s48
    %p55 = scmp.eq.s32.totalorder %s17, 1
    %p56 = por %p54, %p55
    %p57 = scmp.ne.s32.totalorder %s48, %s49
    %p58 = scmp.eq.s32.totalorder %s17, 0
    %p59 = por %p57, %p58
    %p60 = scmp.ne.s32.totalorder %s48, %s49
    %p61 = scmp.eq.s32.totalorder %s18, 1
    %p62 = por %p60, %p61
    %p64 = scmp.ne.s32.totalorder %s49, %s63
    %p65 = scmp.eq.s32.totalorder %s18, 0
    %p66 = por %p64, %p65
    %s68 = sadd.s32 %s67, 1
    %p71 = scmp.eq.s32.totalorder %s12, 1
    %p72 = scmp.ne.s32.totalorder %s67, %s69
    %p73 = scmp.eq.s32.totalorder %s12, 0
    %p74 = por %p72, %p73
    %p75 = scmp.ne.s32.totalorder %s67, %s69
    %p76 = scmp.eq.s32.totalorder %s17, 1
    %p77 = por %p75, %p76
    %p78 = scmp.ne.s32.totalorder %s69, %s70
    %p79 = scmp.eq.s32.totalorder %s17, 0
    %p80 = por %p78, %p79
    %p81 = scmp.ne.s32.totalorder %s69, %s70
    %p82 = scmp.eq.s32.totalorder %s18, 1
    %p83 = por %p81, %p82
    %p85 = scmp.ne.s32.totalorder %s70, %s84
    %p86 = scmp.eq.s32.totalorder %s18, 0
    %p87 = por %p85, %p86
    %s88 = ssub.s32 %s12, %s19
    %p89 = scmp.eq.s32.totalorder %s88, 0
    %s91 = sadd.s32 %s90, 1
    %s92 = scalar_select %p89, %s90, %s91
    %p95 = pneg %p89
    %p96 = scmp.eq.s32.totalorder %s12, 1
    %p97 = por %p95, %p96
    %p98 = scmp.ne.s32.totalorder %s90, %s93
    %p99 = scmp.eq.s32.totalorder %s12, 0
    %p100 = por %p98, %p99
    %p101 = scmp.ne.s32.totalorder %s90, %s93
    %p102 = scmp.eq.s32.totalorder %s17, 1
    %p103 = por %p101, %p102
    %p104 = scmp.ne.s32.totalorder %s93, %s94
    %p105 = scmp.eq.s32.totalorder %s17, 0
    %p106 = por %p104, %p105
    %p107 = scmp.ne.s32.totalorder %s93, %s94
    %p108 = scmp.eq.s32.totalorder %s18, 1
    %p109 = por %p107, %p108
    %p111 = scmp.ne.s32.totalorder %s94, %s110
    %p112 = scmp.eq.s32.totalorder %s18, 0
    %p113 = por %p111, %p112
    %s114 = ssub.s32 %s12, %s19
    %p115 = scmp.eq.s32.totalorder %s114, 0
    %s117 = sadd.s32 %s116, 1
    %s118 = scalar_select %p115, %s116, %s117
    %p121 = pneg %p115
    %p122 = scmp.eq.s32.totalorder %s12, 1
    %p123 = por %p121, %p122
    %p124 = scmp.ne.s32.totalorder %s116, %s119
    %p125 = scmp.eq.s32.totalorder %s12, 0
    %p126 = por %p124, %p125
    %p127 = scmp.ne.s32.totalorder %s116, %s119
    %p128 = scmp.eq.s32.totalorder %s17, 1
    %p129 = por %p127, %p128
    %p130 = scmp.ne.s32.totalorder %s119, %s120
    %p131 = scmp.eq.s32.totalorder %s17, 0
    %p132 = por %p130, %p131
    %p133 = scmp.ne.s32.totalorder %s119, %s120
    %p134 = scmp.eq.s32.totalorder %s18, 1
    %p135 = por %p133, %p134
    %p137 = scmp.ne.s32.totalorder %s120, %s136
    %p138 = scmp.eq.s32.totalorder %s18, 0
    %p139 = por %p137, %p138
    %s140 = ssub.s32 %s12, %s19
    %p141 = scmp.eq.s32.totalorder %s140, 0
    %s143 = sadd.s32 %s142, 1
    %s144 = scalar_select %p141, %s142, %s143
    %p147 = pneg %p141
    %p148 = scmp.eq.s32.totalorder %s12, 1
    %p149 = por %p147, %p148
    %p150 = scmp.ne.s32.totalorder %s142, %s145
    %p151 = scmp.eq.s32.totalorder %s12, 0
    %p152 = por %p150, %p151
    %p153 = scmp.ne.s32.totalorder %s142, %s145
    %p154 = scmp.eq.s32.totalorder %s17, 1
    %p155 = por %p153, %p154
    %p156 = scmp.ne.s32.totalorder %s145, %s146
    %p157 = scmp.eq.s32.totalorder %s17, 0
    %p158 = por %p156, %p157
    %p159 = scmp.ne.s32.totalorder %s145, %s146
    %p160 = scmp.eq.s32.totalorder %s18, 1
    %p161 = por %p159, %p160
    %p163 = scmp.ne.s32.totalorder %s146, %s162
    %p164 = scmp.eq.s32.totalorder %s18, 0
    %p165 = por %p163, %p164
    %p166 = scmp.le.s32.totalorder 1, %s12
    %p167 = scmp.lt.s32.totalorder %s12, 3
    %p168 = pnand %p166, %p167
    %p169 = pneg %p168
    // Predicated region
    $region9: #{_l2sim_loss_impl.1} parent=5 // pred_check
      _
    $region10: #{_l2sim_loss_impl.1} parent=5 // pred_check_branch
      %171 = sbr.rel (%p168) target = $region12
    $region11: #{_l2sim_loss_impl.1} parent=5 // pred_region
      %s172 = ssub.s32 %s12, 1
      // Predicated region
      $region13: #{_l2sim_loss_impl.1} parent=11 // pred_check
        %p173 = pneg %p59
      $region14: #{_l2sim_loss_impl.1} parent=11 // pred_check_branch
        %175 = sbr.rel (%p173) target = $region16
      $region15: #{_l2sim_loss_impl.1} parent=11 // pred_region
        _
      $region16: #{_l2sim_loss_impl.1} parent=11 // pred_fallthru
        _
      // Predicated region
      $region17: #{_l2sim_loss_impl.1} parent=11 // pred_check
        %p176 = pneg %p80
      $region18: #{_l2sim_loss_impl.1} parent=11 // pred_check_branch
        %178 = sbr.rel (%p176) target = $region20
      $region19: #{_l2sim_loss_impl.1} parent=11 // pred_region
        _
      $region20: #{_l2sim_loss_impl.1} parent=11 // pred_fallthru
        _
    $region12: #{_l2sim_loss_impl.1} parent=5 // pred_fallthru
      _
    %p179 = scmp.lt.s32.totalorder %s12, 2
    // Predicated region
    $region21: #{_l2sim_loss_impl.1} parent=5 // pred_check
      %p180 = pneg %p179
    $region22: #{_l2sim_loss_impl.1} parent=5 // pred_check_branch
      %182 = sbr.rel (%p180) target = $region24
    $region23: #{_l2sim_loss_impl.1} parent=5 // pred_region
      // Predicated region
      $region25: #{_l2sim_loss_impl.1} parent=23 // pred_check
        %p183 = pneg %p32
      $region26: #{_l2sim_loss_impl.1} parent=23 // pred_check_branch
        %185 = sbr.rel (%p183) target = $region28
      $region27: #{_l2sim_loss_impl.1} parent=23 // pred_region
        %s186 = smul.u32 2, %s12
        %p187 = scmp.lt.s32.totalorder %s186, 3
        %s188 = scalar_select %p187, %s186, 3
        %s189 = smul.addr %s188, 4
        %s190 = scalar_lea.vmem %s0, %s189
        %s191 = smul.u32 2, %s12
      $region28: #{_l2sim_loss_impl.1} parent=23 // pred_fallthru
        _
      // Predicated region
      $region29: #{_l2sim_loss_impl.1} parent=23 // pred_check
        %p192 = pneg %p100
      $region30: #{_l2sim_loss_impl.1} parent=23 // pred_check_branch
        %194 = sbr.rel (%p192) target = $region32
      $region31: #{_l2sim_loss_impl.1} parent=23 // pred_region
        %s195 = smul.u32 2, %s12
        %p196 = scmp.lt.s32.totalorder %s195, 3
        %s197 = scalar_select %p196, %s195, 3
        %s198 = smul.addr %s197, 8
        %s199 = scalar_lea.vmem %s3, %s198
        %s200 = smul.u32 2, %s12
      $region32: #{_l2sim_loss_impl.1} parent=23 // pred_fallthru
        _
    $region24: #{_l2sim_loss_impl.1} parent=5 // pred_fallthru
      _
    %p201 = scmp.le.s32.totalorder 1, %s12
    %p202 = scmp.lt.s32.totalorder %s12, 3
    %p203 = pnand %p201, %p202
    %p204 = pneg %p203
    // Predicated region
    $region33: #{_l2sim_loss_impl.1} parent=5 // pred_check
      _
    $region34: #{_l2sim_loss_impl.1} parent=5 // pred_check_branch
      %206 = sbr.rel (%p203) target = $region36
    $region35: #{_l2sim_loss_impl.1} parent=5 // pred_region
      %s207 = ssub.s32 %s12, 1
      %s208 = smul.u32 2, %s17
      %p209 = scmp.lt.s32.totalorder %s208, 3
      %s210 = scalar_select %p209, %s208, 3
      %s211 = smul.addr %s210, 4
      %s212 = scalar_lea.vmem %s0, %s211
      %p213 = pneg %p38
      %p214 = pneg %p35
      %p215 = pneg %p59
      %p216 = pneg %p56
      %p217 = pneg %p80
      %p218 = pneg %p77
      %s219 = smul.u32 2, %s17
      %p220 = scmp.lt.s32.totalorder %s219, 3
      %s221 = scalar_select %p220, %s219, 3
      %s222 = smul.addr %s221, 8
      %s223 = scalar_lea.vmem %s3, %s222
      %p224 = pneg %p106
      %p225 = pneg %p103
      %p226 = pneg %p132
      %p227 = pneg %p129
      %p228 = scmp.lt.s32.totalorder %s17, 1
      %s229 = scalar_select %p228, %s17, 1
      %s230 = scalar_lea.vmem %s4, %s229
      %p231 = pneg %p158
      %p232 = pneg %p155
      %p233 = scmp.lt.s32.totalorder %s17, 1
      %s234 = scalar_select %p233, %s17, 1
      %s235 = scalar_lea.vmem %s5, %s234
      %s236 = smul.u32 2, %s17
      %p237 = scmp.lt.s32.totalorder %s236, 3
      %s238 = scalar_select %p237, %s236, 3
      %s239 = smul.addr %s238, 4
      %s240 = scalar_lea.vmem %s0, %s239
      %s241 = smul.u32 2, %s17
      %s242 = smul.u32 2, %s17
      %p243 = scmp.lt.s32.totalorder %s242, 3
      %s244 = scalar_select %p243, %s242, 3
      %s245 = smul.addr %s244, 8
      %s246 = scalar_lea.vmem %s3, %s245
      %s247 = smul.u32 2, %s17
      %p248 = scmp.lt.s32.totalorder %s17, 1
      %s249 = scalar_select %p248, %s17, 1
      %s250 = scalar_lea.vmem %s4, %s249
      %p251 = scmp.lt.s32.totalorder %s17, 1
      %s252 = scalar_select %p251, %s17, 1
      %s253 = scalar_lea.vmem %s5, %s252
      %v255 = vld [vmem:[%s240] sm:$0xf]
      %v256 = vld [vmem:[%s240 + $0x4] sm:$0xf]
      %v257 = vld [vmem:[%s246] sm:$0xff]
      %v258 = vld [vmem:[%s246 + $0x8] sm:$0xff]
      %v259 = vld [vmem:[%s1] sm:$0xf]
      %v260 = vld [vmem:[%s1 + $0x4] sm:$0xf]
      %v261 = vld [vmem:[%s1 + $0x8] sm:$0xf]
      %v262 = vld [vmem:[%s1 + $0xc] sm:$0xf]
      %v263 = vld [vmem:[%s1 + $0x10] sm:$0xf]
      %v264 = vld [vmem:[%s1 + $0x14] sm:$0xf]
      %v265 = vld [vmem:[%s1 + $0x18] sm:$0xf]
      %v266 = vld [vmem:[%s1 + $0x1c] sm:$0xf]
      %v267 = vld [vmem:[%s1 + $0x20] sm:$0xf]
      %v268 = vld [vmem:[%s1 + $0x24] sm:$0xf]
      %v269 = vld [vmem:[%s1 + $0x28] sm:$0xf]
      %v270 = vld [vmem:[%s1 + $0x2c] sm:$0xf]
      %v271 = vld [vmem:[%s1 + $0x30] sm:$0xf]
      %v272 = vld [vmem:[%s1 + $0x34] sm:$0xf]
      %v273 = vld [vmem:[%s1 + $0x38] sm:$0xf]
      %v274 = vld [vmem:[%s1 + $0x3c] sm:$0xf]
      %v275 = vld [vmem:[%s2] sm:$0x1]
      %v277 = vlaneseq
      %v278 = vshrl.u32 %v277, 7
      %v279 = vsub.s32 0, %v278
      %v280 = vrot.slane %v275, %v279
      %v284 = vunpack.c.l.b16 %v255
      %v285 = vunpack.c.l.b16 %v256
      %v286 = vpack.c.b16 %v285, %v284
      %v304 = vunpack.c.l.b16 %v259
      %v305 = vunpack.c.l.b16 %v260
      %v306 = vunpack.c.l.b16 %v261
      %v307 = vunpack.c.l.b16 %v262
      %v308 = vunpack.c.l.b16 %v263
      %v309 = vunpack.c.l.b16 %v264
      %v310 = vunpack.c.l.b16 %v265
      %v311 = vunpack.c.l.b16 %v266
      %v312 = vunpack.c.l.b16 %v267
      %v313 = vunpack.c.l.b16 %v268
      %v314 = vunpack.c.l.b16 %v269
      %v315 = vunpack.c.l.b16 %v270
      %v316 = vunpack.c.l.b16 %v271
      %v317 = vunpack.c.l.b16 %v272
      %v318 = vunpack.c.l.b16 %v273
      %v319 = vunpack.c.l.b16 %v274
      %v320 = vpack.c.b16 %v305, %v304
      %v321 = vpack.c.b16 %v307, %v306
      %v322 = vpack.c.b16 %v309, %v308
      %v323 = vpack.c.b16 %v311, %v310
      %v324 = vpack.c.b16 %v313, %v312
      %v325 = vpack.c.b16 %v315, %v314
      %v326 = vpack.c.b16 %v317, %v316
      %v327 = vpack.c.b16 %v319, %v318
      %336 = vmatprep.subr.bf16.mxu0 0
      %337 = vmatpush1.bf16.xpose.msra.mxu0 %v327
      %338 = vmatprep.subr.bf16.mxu0 0
      %339 = vmatpush1.bf16.xpose.msra.mxu0 %v326
      %340 = vmatprep.subr.bf16.mxu0 0
      %341 = vmatpush1.bf16.xpose.msra.mxu0 %v325
      %342 = vmatprep.subr.bf16.mxu0 0
      %343 = vmatpush1.bf16.xpose.msra.mxu0 %v324
      %344 = vmatprep.subr.bf16.mxu0 0
      %345 = vmatpush1.bf16.xpose.msra.mxu0 %v323
      %346 = vmatprep.subr.bf16.mxu0 0
      %347 = vmatpush1.bf16.xpose.msra.mxu0 %v322
      %348 = vmatprep.subr.bf16.mxu0 0
      %349 = vmatpush1.bf16.xpose.msra.mxu0 %v321
      %350 = vmatprep.subr.bf16.mxu0 0
      %351 = vmatpush1.bf16.xpose.msra.mxu0 %v320
      %352 = vmatprep.subr.bf16.mxu0 0
      %353 = vmatpush2.bf16.xpose.msra.mxu0 0
      %354 = vmatprep.subr.bf16.mxu0 0
      %355 = vmatpush2.bf16.xpose.msra.mxu0 0
      %356 = vmatprep.subr.bf16.mxu0 0
      %357 = vmatpush2.bf16.xpose.msra.mxu0 0
      %358 = vmatprep.subr.bf16.mxu0 0
      %359 = vmatpush2.bf16.xpose.msra.mxu0 0
      %360 = vmatprep.subr.bf16.mxu0 0
      %361 = vmatpush2.bf16.xpose.msra.mxu0 0
      %362 = vmatprep.subr.bf16.mxu0 0
      %363 = vmatpush2.bf16.xpose.msra.mxu0 0
      %364 = vmatprep.subr.bf16.mxu0 0
      %365 = vmatpush2.bf16.xpose.msra.mxu0 0
      %366 = vmatprep.subr.bf16.mxu0 0
      %367 = vmatpush2.bf16.xpose.msra.mxu0 0
      %368 = vmatprep.mubr.bf16.mxu0 0
      %369 = vmatmul.mubr.bf16.gmra.mxu0 %v286
      %v370 = vpop.f32.mrf.mxu0
      %v371 = vadd.f32 %v280, %v370
      %v372 = vpop.f32.mrf.mxu0
      %v373 = vpop.f32.mrf.mxu0
      %v374 = vadd.f32 %v280, %v373
      %v375 = vpop.f32.mrf.mxu0
      %376 = vdwg.mxu0
      %v377 = vlaneseq
      %v378 = vand.u32 %v377, 127
      %v379 = vstv 0
      %v380 = vadd.s32 %v378, %v379
      %381 = vset.pattern.permute.xlu0 0
      %382 = vperm.xlu0 %381, %v257
      %v383 = vpop.permute.xlu0 %382
      %384 = vset.pattern.permute.xlu0 0
      %385 = vperm.xlu0 %384, %v258
      %v386 = vpop.permute.xlu0 %385
      %vm387 = vcmp.eq.s32.totalorder %v380, %v383
      %vm388 = vcmp.eq.s32.totalorder %v380, %v386
      %v389 = vsel %vm387, %v371, -1e+30
      %v390 = vsel %vm388, %v374, -1e+30
      %391 = vmax.xlane.f32.xlu0 %v389
      %v392 = vpop.xlane.xlu0 %391
      %393 = vmax.xlane.f32.xlu0 %v390
      %v394 = vpop.xlane.xlu0 %393
      %v395 = vmax.f32 %v392, -1e+30
      %v396 = vmax.f32 %v394, -1e+30
      %397 = vmax.xlane.f32.xlu0 %v371
      %v398 = vpop.xlane.xlu0 %397
      %399 = vmax.xlane.f32.xlu0 %v374
      %v400 = vpop.xlane.xlu0 %399
      %v401 = vmax.f32 %v398, -1e+30
      %v402 = vmax.f32 %v400, -1e+30
      %v403 = vsub.f32 -1e+30, %v401
      %v404 = vsub.f32 -1e+30, %v402
      %v405 = vmul.f32 %v403, 1.442695
      %v406 = vpow.pop %v405
      %v407 = vmul.f32 %v404, 1.442695
      %v408 = vpow.pop %v407
      %v409 = vmul.f32 %v406, 0.0
      %v410 = vmul.f32 %v408, 0.0
      %v411 = vsub.f32 %v371, %v401
      %v412 = vsub.f32 %v374, %v402
      %v413 = vmul.f32 %v411, 1.442695
      %v414 = vpow.pop %v413
      %v415 = vmul.f32 %v412, 1.442695
      %v416 = vpow.pop %v415
      %417 = vadd.xlane.f32.xlu0 %v414
      %v418 = vpop.xlane.xlu0 %417
      %419 = vadd.xlane.f32.xlu0 %v416
      %v420 = vpop.xlane.xlu0 %419
      %v421 = vadd.f32 %v409, %v418
      %v422 = vadd.f32 %v410, %v420
      %vm423 = vcmp.ge.s32.totalorder %v257, 0
      %vm424 = vcmp.ge.s32.totalorder %v258, 0
      %v425 = vsel %vm423, 1, 0
      %v426 = vsel %vm424, 1, 0
      %v427 = vcvt.s32.f32 %v425
      %v428 = vcvt.s32.f32 %v426
      %v429 = vlog2.pop %v421
      %v430 = vmul.f32 %v429, 0.6931472
      %v431 = vlog2.pop %v422
      %v432 = vmul.f32 %v431, 0.6931472
      %v433 = vadd.f32 %v401, %v430
      %v434 = vadd.f32 %v402, %v432
      %v435 = vsub.f32 %v433, %v395
      %v436 = vsub.f32 %v434, %v396
      %v437 = vmul.f32 %v435, %v427
      %v438 = vmul.f32 %v436, %v428
      %vm439 = vcmask 7168
      %v440 = vsel %vm439, %v437, 0.0
      %v441 = vsel %vm439, %v438, 0.0
      %v442 = vadd.f32 %v440, %v441
      %v443 = vrot.slane %v442, 4
      %v444 = vadd.f32 %v442, %v443
      %v445 = vrot.slane %v444, 2
      %v446 = vadd.f32 %v444, %v445
      %v447 = vrot.slane %v446, 1
      %v448 = vadd.f32 %v446, %v447
      %v449 = vsel %vm439, %v427, 0.0
      %v450 = vsel %vm439, %v428, 0.0
      %v451 = vadd.f32 %v449, %v450
      %v452 = vrot.slane %v451, 4
      %v453 = vadd.f32 %v451, %v452
      %v454 = vrot.slane %v453, 2
      %v455 = vadd.f32 %v453, %v454
      %v456 = vrot.slane %v455, 1
      %v457 = vadd.f32 %v455, %v456
      %459 = vset.pattern.permute.xlu0 0
      %460 = vperm.xlu0 %459, %v448
      %v461 = vpop.permute.xlu0 %460
      %463 = vst [vmem:[%s250] sm:$0x1] %v461
      %465 = vset.pattern.permute.xlu0 0
      %466 = vperm.xlu0 %465, %v457
      %v467 = vpop.permute.xlu0 %466
      %469 = vst [vmem:[%s253] sm:$0x1] %v467
      %p470 = scmp.lt.s32.totalorder %s17, 1
      %s471 = scalar_select %p470, %s17, 1
      %s472 = scalar_lea.vmem %s4, %s471
      %p473 = scmp.lt.s32.totalorder %s17, 1
      %s474 = scalar_select %p473, %s17, 1
      %s475 = scalar_lea.vmem %s5, %s474
      // Predicated region
      $region37: #{_l2sim_loss_impl.1} parent=35 // pred_check
        %p476 = pneg %p129
      $region38: #{_l2sim_loss_impl.1} parent=35 // pred_check_branch
        %478 = sbr.rel (%p476) target = $region40
      $region39: #{_l2sim_loss_impl.1} parent=35 // pred_region
        _
      $region40: #{_l2sim_loss_impl.1} parent=35 // pred_fallthru
        _
      // Predicated region
      $region41: #{_l2sim_loss_impl.1} parent=35 // pred_check
        %p479 = pneg %p155
      $region42: #{_l2sim_loss_impl.1} parent=35 // pred_check_branch
        %481 = sbr.rel (%p479) target = $region44
      $region43: #{_l2sim_loss_impl.1} parent=35 // pred_region
        _
      $region44: #{_l2sim_loss_impl.1} parent=35 // pred_fallthru
        _
    $region36: #{_l2sim_loss_impl.1} parent=5 // pred_fallthru
      _
    %p482 = scmp.le.s32.totalorder 2, %s12
    // Predicated region
    $region45: #{_l2sim_loss_impl.1} parent=5 // pred_check
      %p483 = pneg %p482
    $region46: #{_l2sim_loss_impl.1} parent=5 // pred_check_branch
      %485 = sbr.rel (%p483) target = $region48
    $region47: #{_l2sim_loss_impl.1} parent=5 // pred_region
      %s486 = ssub.s32 %s12, 2
      // Predicated region
      $region49: #{_l2sim_loss_impl.1} parent=47 // pred_check
        %p487 = pneg %p135
      $region50: #{_l2sim_loss_impl.1} parent=47 // pred_check_branch
        %489 = sbr.rel (%p487) target = $region52
      $region51: #{_l2sim_loss_impl.1} parent=47 // pred_region
        %p490 = scmp.lt.s32.totalorder %s18, 1
        %s491 = scalar_select %p490, %s18, 1
        %s492 = scalar_lea.vmem %s4, %s491
      $region52: #{_l2sim_loss_impl.1} parent=47 // pred_fallthru
        _
      // Predicated region
      $region53: #{_l2sim_loss_impl.1} parent=47 // pred_check
        %p493 = pneg %p161
      $region54: #{_l2sim_loss_impl.1} parent=47 // pred_check_branch
        %495 = sbr.rel (%p493) target = $region56
      $region55: #{_l2sim_loss_impl.1} parent=47 // pred_region
        %p496 = scmp.lt.s32.totalorder %s18, 1
        %s497 = scalar_select %p496, %s18, 1
        %s498 = scalar_lea.vmem %s5, %s497
      $region56: #{_l2sim_loss_impl.1} parent=47 // pred_fallthru
        _
    $region48: #{_l2sim_loss_impl.1} parent=5 // pred_fallthru
      _
  $region6: #{_l2sim_loss_impl.1} parent=0 // loop_footer
    %s16 = sadd.s32 1, %s12
  $region7: #{_l2sim_loss_impl.1} parent=0 // loop_footer_branch
    %11 = sbr.rel target = $region3
  $region8: #{_l2sim_loss_impl.1} parent=0 // loop_exit
    _

// kernel: _l2sim_loss_impl.1
$region0: #{_l2sim_loss_impl.1}
  #allocation0 [shape = 'u32[]', space=smem, size = 0x4, offset = 0x4, fixed_abs, tag = 'smem constant byte address 0x4 - core index']
  #allocation1 [shape = 'u32[144,128]{1,0:T(1,128)}', space=vmem, size = 0x12000, scoped, tag = 'internal scratch']
  %s0 = inlined_call_operand.vmem [shape: bf16[32,128], index: 0, kind: input, shape index: {}]
  %s1 = inlined_call_operand.vmem [shape: bf16[128,128], index: 1, kind: input, shape index: {}]
  %s2 = inlined_call_operand.vmem [shape: f32[1,128], index: 2, kind: input, shape index: {}]
  %s3 = inlined_call_operand.vmem [shape: s32[32,1], index: 3, kind: input, shape index: {}]
  %s4 = inlined_call_operand.vmem [shape: f32[1,256], index: 4, kind: output, shape index: {0}]
  %s5 = inlined_call_operand.vmem [shape: f32[1,256], index: 5, kind: output, shape index: {1}]
  %6 = xla_tuple %s4, %s5
  %s7 = sld [smem:[#allocation0]]
  $region57: #{_l2sim_loss_impl.1} parent=0
    _
  %s9 = ssub.s32 1, %s7
  %s10 = scalar_select 0, %s9, %s7
  loop: start=0, step=1, limit=4
  $region2: #{_l2sim_loss_impl.1} parent=0 // loop_pre_header
    _
  $region3: #{_l2sim_loss_impl.1} parent=0 // loop_header
    %s12 = sphi 0, %s16
    %p13 = scmp.ge.s32.totalorder %s12, 4
    %s22 = sphi 0, %s24
    %s25 = sphi 0, %s22
    %s26 = sphi 0, %s25
    %s42 = sphi 0, %s26
    %s46 = sphi 0, %s46
    %s48 = sphi 0, %s46
    %s49 = sphi 0, %s48
    %s63 = sphi 0, %s49
    %s67 = sphi 0, %s67
    %s69 = sphi 0, %s67
    %s70 = sphi 0, %s69
    %s84 = sphi 0, %s70
    %s90 = sphi 0, %s92
    %s93 = sphi 0, %s90
    %s94 = sphi 0, %s93
    %s110 = sphi 0, %s94
    %s116 = sphi 0, %s118
    %s119 = sphi 0, %s116
    %s120 = sphi 0, %s119
    %s136 = sphi 0, %s120
    %s142 = sphi 0, %s144
    %s145 = sphi 0, %s142
    %s146 = sphi 0, %s145
    %s162 = sphi 0, %s146
  $region4: #{_l2sim_loss_impl.1} parent=0 // loop_header_branch
    %15 = sbr.rel (%p13) target = $region8
  $region5: #{_l2sim_loss_impl.1} parent=0 // loop_body
    %s17 = ssub.s32 %s12, 1
    %s18 = ssub.s32 %s12, 2
    %s19 = sadd.s32 %s12, 1
    %s20 = ssub.s32 %s12, %s19
    %p21 = scmp.eq.s32.totalorder %s20, 0
    %s23 = sadd.s32 %s22, 1
    %s24 = scalar_select %p21, %s22, %s23
    %p27 = pneg %p21
    %p28 = scmp.eq.s32.totalorder %s12, 1
    %p29 = por %p27, %p28
    %p30 = scmp.ne.s32.totalorder %s22, %s25
    %p31 = scmp.eq.s32.totalorder %s12, 0
    %p32 = por %p30, %p31
    %p33 = scmp.ne.s32.totalorder %s22, %s25
    %p34 = scmp.eq.s32.totalorder %s17, 1
    %p35 = por %p33, %p34
    %p36 = scmp.ne.s32.totalorder %s25, %s26
    %p37 = scmp.eq.s32.totalorder %s17, 0
    %p38 = por %p36, %p37
    %p39 = scmp.ne.s32.totalorder %s25, %s26
    %p40 = scmp.eq.s32.totalorder %s18, 1
    %p41 = por %p39, %p40
    %p43 = scmp.ne.s32.totalorder %s26, %s42
    %p44 = scmp.eq.s32.totalorder %s18, 0
    %p45 = por %p43, %p44
    %s47 = sadd.s32 %s46, 1
    %p50 = scmp.eq.s32.totalorder %s12, 1
    %p51 = scmp.ne.s32.totalorder %s46, %s48
    %p52 = scmp.eq.s32.totalorder %s12, 0
    %p53 = por %p51, %p52
    %p54 = scmp.ne.s32.totalorder %s46, %s48
    %p55 = scmp.eq.s32.totalorder %s17, 1
    %p56 = por %p54, %p55
    %p57 = scmp.ne.s32.totalorder %s48, %s49
    %p58 = scmp.eq.s32.totalorder %s17, 0
    %p59 = por %p57, %p58
    %p60 = scmp.ne.s32.totalorder %s48, %s49
    %p61 = scmp.eq.s32.totalorder %s18, 1
    %p62 = por %p60, %p61
    %p64 = scmp.ne.s32.totalorder %s49, %s63
    %p65 = scmp.eq.s32.totalorder %s18, 0
    %p66 = por %p64, %p65
    %s68 = sadd.s32 %s67, 1
    %p71 = scmp.eq.s32.totalorder %s12, 1
    %p72 = scmp.ne.s32.totalorder %s67, %s69
    %p73 = scmp.eq.s32.totalorder %s12, 0
    %p74 = por %p72, %p73
    %p75 = scmp.ne.s32.totalorder %s67, %s69
    %p76 = scmp.eq.s32.totalorder %s17, 1
    %p77 = por %p75, %p76
    %p78 = scmp.ne.s32.totalorder %s69, %s70
    %p79 = scmp.eq.s32.totalorder %s17, 0
    %p80 = por %p78, %p79
    %p81 = scmp.ne.s32.totalorder %s69, %s70
    %p82 = scmp.eq.s32.totalorder %s18, 1
    %p83 = por %p81, %p82
    %p85 = scmp.ne.s32.totalorder %s70, %s84
    %p86 = scmp.eq.s32.totalorder %s18, 0
    %p87 = por %p85, %p86
    %s88 = ssub.s32 %s12, %s19
    %p89 = scmp.eq.s32.totalorder %s88, 0
    %s91 = sadd.s32 %s90, 1
    %s92 = scalar_select %p89, %s90, %s91
    %p95 = pneg %p89
    %p96 = scmp.eq.s32.totalorder %s12, 1
    %p97 = por %p95, %p96
    %p98 = scmp.ne.s32.totalorder %s90, %s93
    %p99 = scmp.eq.s32.totalorder %s12, 0
    %p100 = por %p98, %p99
    %p101 = scmp.ne.s32.totalorder %s90, %s93
    %p102 = scmp.eq.s32.totalorder %s17, 1
    %p103 = por %p101, %p102
    %p104 = scmp.ne.s32.totalorder %s93, %s94
    %p105 = scmp.eq.s32.totalorder %s17, 0
    %p106 = por %p104, %p105
    %p107 = scmp.ne.s32.totalorder %s93, %s94
    %p108 = scmp.eq.s32.totalorder %s18, 1
    %p109 = por %p107, %p108
    %p111 = scmp.ne.s32.totalorder %s94, %s110
    %p112 = scmp.eq.s32.totalorder %s18, 0
    %p113 = por %p111, %p112
    %s114 = ssub.s32 %s12, %s19
    %p115 = scmp.eq.s32.totalorder %s114, 0
    %s117 = sadd.s32 %s116, 1
    %s118 = scalar_select %p115, %s116, %s117
    %p121 = pneg %p115
    %p122 = scmp.eq.s32.totalorder %s12, 1
    %p123 = por %p121, %p122
    %p124 = scmp.ne.s32.totalorder %s116, %s119
    %p125 = scmp.eq.s32.totalorder %s12, 0
    %p126 = por %p124, %p125
    %p127 = scmp.ne.s32.totalorder %s116, %s119
    %p128 = scmp.eq.s32.totalorder %s17, 1
    %p129 = por %p127, %p128
    %p130 = scmp.ne.s32.totalorder %s119, %s120
    %p131 = scmp.eq.s32.totalorder %s17, 0
    %p132 = por %p130, %p131
    %p133 = scmp.ne.s32.totalorder %s119, %s120
    %p134 = scmp.eq.s32.totalorder %s18, 1
    %p135 = por %p133, %p134
    %p137 = scmp.ne.s32.totalorder %s120, %s136
    %p138 = scmp.eq.s32.totalorder %s18, 0
    %p139 = por %p137, %p138
    %s140 = ssub.s32 %s12, %s19
    %p141 = scmp.eq.s32.totalorder %s140, 0
    %s143 = sadd.s32 %s142, 1
    %s144 = scalar_select %p141, %s142, %s143
    %p147 = pneg %p141
    %p148 = scmp.eq.s32.totalorder %s12, 1
    %p149 = por %p147, %p148
    %p150 = scmp.ne.s32.totalorder %s142, %s145
    %p151 = scmp.eq.s32.totalorder %s12, 0
    %p152 = por %p150, %p151
    %p153 = scmp.ne.s32.totalorder %s142, %s145
    %p154 = scmp.eq.s32.totalorder %s17, 1
    %p155 = por %p153, %p154
    %p156 = scmp.ne.s32.totalorder %s145, %s146
    %p157 = scmp.eq.s32.totalorder %s17, 0
    %p158 = por %p156, %p157
    %p159 = scmp.ne.s32.totalorder %s145, %s146
    %p160 = scmp.eq.s32.totalorder %s18, 1
    %p161 = por %p159, %p160
    %p163 = scmp.ne.s32.totalorder %s146, %s162
    %p164 = scmp.eq.s32.totalorder %s18, 0
    %p165 = por %p163, %p164
    %p166 = scmp.le.s32.totalorder 1, %s12
    %p167 = scmp.lt.s32.totalorder %s12, 3
    %p168 = pnand %p166, %p167
    %p169 = pneg %p168
    // Predicated region
    $region9: #{_l2sim_loss_impl.1} parent=5 // pred_check
      _
    $region10: #{_l2sim_loss_impl.1} parent=5 // pred_check_branch
      %171 = sbr.rel (%p168) target = $region12
    $region11: #{_l2sim_loss_impl.1} parent=5 // pred_region
      %s172 = ssub.s32 %s12, 1
      // Predicated region
      $region13: #{_l2sim_loss_impl.1} parent=11 // pred_check
        %p173 = pneg %p59
      $region14: #{_l2sim_loss_impl.1} parent=11 // pred_check_branch
        %175 = sbr.rel (%p173) target = $region16
      $region15: #{_l2sim_loss_impl.1} parent=11 // pred_region
        _
      $region16: #{_l2sim_loss_impl.1} parent=11 // pred_fallthru
        _
      // Predicated region
      $region17: #{_l2sim_loss_impl.1} parent=11 // pred_check
        %p176 = pneg %p80
      $region18: #{_l2sim_loss_impl.1} parent=11 // pred_check_branch
        %178 = sbr.rel (%p176) target = $region20
      $region19: #{_l2sim_loss_impl.1} parent=11 // pred_region
        _
      $region20: #{_l2sim_loss_impl.1} parent=11 // pred_fallthru
        _
    $region12: #{_l2sim_loss_impl.1} parent=5 // pred_fallthru
      _
    %p179 = scmp.lt.s32.totalorder %s12, 2
    // Predicated region
    $region21: #{_l2sim_loss_impl.1} parent=5 // pred_check
      %p180 = pneg %p179
    $region22: #{_l2sim_loss_impl.1} parent=5 // pred_check_branch
      %182 = sbr.rel (%p180) target = $region24
    $region23: #{_l2sim_loss_impl.1} parent=5 // pred_region
      // Predicated region
      $region25: #{_l2sim_loss_impl.1} parent=23 // pred_check
        %p183 = pneg %p32
      $region26: #{_l2sim_loss_impl.1} parent=23 // pred_check_branch
        %185 = sbr.rel (%p183) target = $region28
      $region27: #{_l2sim_loss_impl.1} parent=23 // pred_region
        %s186 = smul.u32 2, %s12
        %p187 = scmp.lt.s32.totalorder %s186, 3
        %s188 = scalar_select %p187, %s186, 3
        %s189 = smul.addr %s188, 4
        %s190 = scalar_lea.vmem %s0, %s189
        %s191 = smul.u32 2, %s12
      $region28: #{_l2sim_loss_impl.1} parent=23 // pred_fallthru
        _
      // Predicated region
      $region29: #{_l2sim_loss_impl.1} parent=23 // pred_check
        %p192 = pneg %p100
      $region30: #{_l2sim_loss_impl.1} parent=23 // pred_check_branch
        %194 = sbr.rel (%p192) target = $region32
      $region31: #{_l2sim_loss_impl.1} parent=23 // pred_region
        %s195 = smul.u32 2, %s12
        %p196 = scmp.lt.s32.totalorder %s195, 3
        %s197 = scalar_select %p196, %s195, 3
        %s198 = smul.addr %s197, 8
        %s199 = scalar_lea.vmem %s3, %s198
        %s200 = smul.u32 2, %s12
      $region32: #{_l2sim_loss_impl.1} parent=23 // pred_fallthru
        _
    $region24: #{_l2sim_loss_impl.1} parent=5 // pred_fallthru
      _
    %p201 = scmp.le.s32.totalorder 1, %s12
    %p202 = scmp.lt.s32.totalorder %s12, 3
    %p203 = pnand %p201, %p202
    %p204 = pneg %p203
    // Predicated region
    $region33: #{_l2sim_loss_impl.1} parent=5 // pred_check
      _
    $region34: #{_l2sim_loss_impl.1} parent=5 // pred_check_branch
      %206 = sbr.rel (%p203) target = $region36
    $region35: #{_l2sim_loss_impl.1} parent=5 // pred_region
      %s207 = ssub.s32 %s12, 1
      %s208 = smul.u32 2, %s17
      %p209 = scmp.lt.s32.totalorder %s208, 3
      %s210 = scalar_select %p209, %s208, 3
      %s211 = smul.addr %s210, 4
      %s212 = scalar_lea.vmem %s0, %s211
      %p213 = pneg %p38
      %p214 = pneg %p35
      %p215 = pneg %p59
      %p216 = pneg %p56
      %p217 = pneg %p80
      %p218 = pneg %p77
      %s219 = smul.u32 2, %s17
      %p220 = scmp.lt.s32.totalorder %s219, 3
      %s221 = scalar_select %p220, %s219, 3
      %s222 = smul.addr %s221, 8
      %s223 = scalar_lea.vmem %s3, %s222
      %p224 = pneg %p106
      %p225 = pneg %p103
      %p226 = pneg %p132
      %p227 = pneg %p129
      %p228 = scmp.lt.s32.totalorder %s17, 1
      %s229 = scalar_select %p228, %s17, 1
      %s230 = scalar_lea.vmem %s4, %s229
      %p231 = pneg %p158
      %p232 = pneg %p155
      %p233 = scmp.lt.s32.totalorder %s17, 1
      %s234 = scalar_select %p233, %s17, 1
      %s235 = scalar_lea.vmem %s5, %s234
      %s236 = smul.u32 2, %s17
      %p237 = scmp.lt.s32.totalorder %s236, 3
      %s238 = scalar_select %p237, %s236, 3
      %s239 = smul.addr %s238, 4
      %s240 = scalar_lea.vmem %s0, %s239
      %s241 = smul.u32 2, %s17
      %s242 = smul.u32 2, %s17
      %p243 = scmp.lt.s32.totalorder %s242, 3
      %s244 = scalar_select %p243, %s242, 3
      %s245 = smul.addr %s244, 8
      %s246 = scalar_lea.vmem %s3, %s245
      %s247 = smul.u32 2, %s17
      %p248 = scmp.lt.s32.totalorder %s17, 1
      %s249 = scalar_select %p248, %s17, 1
      %s250 = scalar_lea.vmem %s4, %s249
      %p251 = scmp.lt.s32.totalorder %s17, 1
      %s252 = scalar_select %p251, %s17, 1
      %s253 = scalar_lea.vmem %s5, %s252
      %v255 = vld [vmem:[%s240] sm:$0xf]
      %v256 = vld [vmem:[%s240 + $0x4] sm:$0xf]
      %v257 = vld [vmem:[%s246] sm:$0xff]
      %v258 = vld [vmem:[%s246 + $0x8] sm:$0xff]
      %v259 = vld [vmem:[%s1] sm:$0xf]
      %v260 = vld [vmem:[%s1 + $0x4] sm:$0xf]
      %v261 = vld [vmem:[%s1 + $0x8] sm:$0xf]
      %v262 = vld [vmem:[%s1 + $0xc] sm:$0xf]
      %v263 = vld [vmem:[%s1 + $0x10] sm:$0xf]
      %v264 = vld [vmem:[%s1 + $0x14] sm:$0xf]
      %v265 = vld [vmem:[%s1 + $0x18] sm:$0xf]
      %v266 = vld [vmem:[%s1 + $0x1c] sm:$0xf]
      %v267 = vld [vmem:[%s1 + $0x20] sm:$0xf]
      %v268 = vld [vmem:[%s1 + $0x24] sm:$0xf]
      %v269 = vld [vmem:[%s1 + $0x28] sm:$0xf]
      %v270 = vld [vmem:[%s1 + $0x2c] sm:$0xf]
      %v271 = vld [vmem:[%s1 + $0x30] sm:$0xf]
      %v272 = vld [vmem:[%s1 + $0x34] sm:$0xf]
      %v273 = vld [vmem:[%s1 + $0x38] sm:$0xf]
      %v274 = vld [vmem:[%s1 + $0x3c] sm:$0xf]
      %v275 = vld [vmem:[%s2] sm:$0x1]
      %v277 = vlaneseq
      %v278 = vshrl.u32 %v277, 7
      %v279 = vsub.s32 0, %v278
      %v280 = vrot.slane %v275, %v279
      %v284 = vunpack.c.l.b16 %v255
      %v285 = vunpack.c.l.b16 %v256
      %v286 = vpack.c.b16 %v285, %v284
      %v304 = vunpack.c.l.b16 %v259
      %v305 = vunpack.c.l.b16 %v260
      %v306 = vunpack.c.l.b16 %v261
      %v307 = vunpack.c.l.b16 %v262
      %v308 = vunpack.c.l.b16 %v263
      %v309 = vunpack.c.l.b16 %v264
      %v310 = vunpack.c.l.b16 %v265
      %v311 = vunpack.c.l.b16 %v266
      %v312 = vunpack.c.l.b16 %v267
      %v313 = vunpack.c.l.b16 %v268
      %v314 = vunpack.c.l.b16 %v269
      %v315 = vunpack.c.l.b16 %v270
      %v316 = vunpack.c.l.b16 %v271
      %v317 = vunpack.c.l.b16 %v272
      %v318 = vunpack.c.l.b16 %v273
      %v319 = vunpack.c.l.b16 %v274
      %v320 = vpack.c.b16 %v305, %v304
      %v321 = vpack.c.b16 %v307, %v306
      %v322 = vpack.c.b16 %v309, %v308
      %v323 = vpack.c.b16 %v311, %v310
      %v324 = vpack.c.b16 %v313, %v312
      %v325 = vpack.c.b16 %v315, %v314
      %v326 = vpack.c.b16 %v317, %v316
      %v327 = vpack.c.b16 %v319, %v318
      %336 = vmatprep.subr.bf16.mxu0 0
      %337 = vmatpush1.bf16.xpose.msra.mxu0 %v327
      %338 = vmatprep.subr.bf16.mxu0 0
      %339 = vmatpush1.bf16.xpose.msra.mxu0 %v326
      %340 = vmatprep.subr.bf16.mxu0 0
      %341 = vmatpush1.bf16.xpose.msra.mxu0 %v325
      %342 = vmatprep.subr.bf16.mxu0 0
      %343 = vmatpush1.bf16.xpose.msra.mxu0 %v324
      %344 = vmatprep.subr.bf16.mxu0 0
      %345 = vmatpush1.bf16.xpose.msra.mxu0 %v323
      %346 = vmatprep.subr.bf16.mxu0 0
      %347 = vmatpush1.bf16.xpose.msra.mxu0 %v322
      %348 = vmatprep.subr.bf16.mxu0 0
      %349 = vmatpush1.bf16.xpose.msra.mxu0 %v321
      %350 = vmatprep.subr.bf16.mxu0 0
      %351 = vmatpush1.bf16.xpose.msra.mxu0 %v320
      %352 = vmatprep.subr.bf16.mxu0 0
      %353 = vmatpush2.bf16.xpose.msra.mxu0 0
      %354 = vmatprep.subr.bf16.mxu0 0
      %355 = vmatpush2.bf16.xpose.msra.mxu0 0
      %356 = vmatprep.subr.bf16.mxu0 0
      %357 = vmatpush2.bf16.xpose.msra.mxu0 0
      %358 = vmatprep.subr.bf16.mxu0 0
      %359 = vmatpush2.bf16.xpose.msra.mxu0 0
      %360 = vmatprep.subr.bf16.mxu0 0
      %361 = vmatpush2.bf16.xpose.msra.mxu0 0
      %362 = vmatprep.subr.bf16.mxu0 0
      %363 = vmatpush2.bf16.xpose.msra.mxu0 0
      %364 = vmatprep.subr.bf16.mxu0 0
      %365 = vmatpush2.bf16.xpose.msra.mxu0 0
      %366 = vmatprep.subr.bf16.mxu0 0
      %367 = vmatpush2.bf16.xpose.msra.mxu0 0
      %368 = vmatprep.mubr.bf16.mxu0 0
      %369 = vmatmul.mubr.bf16.gmra.mxu0 %v286
      %v370 = vpop.f32.mrf.mxu0
      %v371 = vadd.f32 %v280, %v370
      %v372 = vpop.f32.mrf.mxu0
      %v373 = vpop.f32.mrf.mxu0
      %v374 = vadd.f32 %v280, %v373
      %v375 = vpop.f32.mrf.mxu0
      %376 = vdwg.mxu0
      %v377 = vlaneseq
      %v378 = vand.u32 %v377, 127
      %v379 = vstv 0
      %v380 = vadd.s32 %v378, %v379
      %381 = vset.pattern.permute.xlu0 0
      %382 = vperm.xlu0 %381, %v257
      %v383 = vpop.permute.xlu0 %382
      %384 = vset.pattern.permute.xlu0 0
      %385 = vperm.xlu0 %384, %v258
      %v386 = vpop.permute.xlu0 %385
      %vm387 = vcmp.eq.s32.totalorder %v380, %v383
      %vm388 = vcmp.eq.s32.totalorder %v380, %v386
      %v389 = vsel %vm387, %v371, -1e+30
      %v390 = vsel %vm388, %v374, -1e+30
      %391 = vmax.xlane.f32.xlu0 %v389
      %v392 = vpop.xlane.xlu0 %391
      %393 = vmax.xlane.f32.xlu0 %v390
      %v394 = vpop.xlane.xlu0 %393
      %v395 = vmax.f32 %v392, -1e+30
      %v396 = vmax.f32 %v394, -1e+30
      %397 = vmax.xlane.f32.xlu0 %v371
      %v398 = vpop.xlane.xlu0 %397
      %399 = vmax.xlane.f32.xlu0 %v374
      %v400 = vpop.xlane.xlu0 %399
      %v401 = vmax.f32 %v398, -1e+30
      %v402 = vmax.f32 %v400, -1e+30
      %v403 = vsub.f32 -1e+30, %v401
      %v404 = vsub.f32 -1e+30, %v402
      %v405 = vmul.f32 %v403, 1.442695
      %v406 = vpow.pop %v405
      %v407 = vmul.f32 %v404, 1.442695
      %v408 = vpow.pop %v407
      %v409 = vmul.f32 %v406, 0.0
      %v410 = vmul.f32 %v408, 0.0
      %v411 = vsub.f32 %v371, %v401
      %v412 = vsub.f32 %v374, %v402
      %v413 = vmul.f32 %v411, 1.442695
      %v414 = vpow.pop %v413
      %v415 = vmul.f32 %v412, 1.442695
      %v416 = vpow.pop %v415
      %417 = vadd.xlane.f32.xlu0 %v414
      %v418 = vpop.xlane.xlu0 %417
      %419 = vadd.xlane.f32.xlu0 %v416
      %v420 = vpop.xlane.xlu0 %419
      %v421 = vadd.f32 %v409, %v418
      %v422 = vadd.f32 %v410, %v420
      %vm423 = vcmp.ge.s32.totalorder %v257, 0
      %vm424 = vcmp.ge.s32.totalorder %v258, 0
      %v425 = vsel %vm423, 1, 0
      %v426 = vsel %vm424, 1, 0
      %v427 = vcvt.s32.f32 %v425
      %v428 = vcvt.s32.f32 %v426
      %v429 = vlog2.pop %v421
      %v430 = vmul.f32 %v429, 0.6931472
      %v431 = vlog2.pop %v422
      %v432 = vmul.f32 %v431, 0.6931472
      %v433 = vadd.f32 %v401, %v430
      %v434 = vadd.f32 %v402, %v432
      %v435 = vsub.f32 %v433, %v395
      %v436 = vsub.f32 %v434, %v396
      %v437 = vmul.f32 %v435, %v427
      %v438 = vmul.f32 %v436, %v428
      %vm439 = vcmask 7168
      %v440 = vsel %vm439, %v437, 0.0
      %v441 = vsel %vm439, %v438, 0.0
      %v442 = vadd.f32 %v440, %v441
      %v443 = vrot.slane %v442, 4
      %v444 = vadd.f32 %v442, %v443
      %v445 = vrot.slane %v444, 2
      %v446 = vadd.f32 %v444, %v445
      %v447 = vrot.slane %v446, 1
      %v448 = vadd.f32 %v446, %v447
      %v449 = vsel %vm439, %v427, 0.0
      %v450 = vsel %vm439, %v428, 0.0
      %v451 = vadd.f32 %v449, %v450
      %v452 = vrot.slane %v451, 4
      %v453 = vadd.f32 %v451, %v452
      %v454 = vrot.slane %v453, 2
      %v455 = vadd.f32 %v453, %v454
      %v456 = vrot.slane %v455, 1
      %v457 = vadd.f32 %v455, %v456
      %459 = vset.pattern.permute.xlu0 0
      %460 = vperm.xlu0 %459, %v448
      %v461 = vpop.permute.xlu0 %460
      %463 = vst [vmem:[%s250] sm:$0x1] %v461
      %465 = vset.pattern.permute.xlu0 0
      %466 = vperm.xlu0 %465, %v457
      %v467 = vpop.permute.xlu0 %466
      %469 = vst [vmem:[%s253] sm:$0x1] %v467
      %p470 = scmp.lt.s32.totalorder %s17, 1
      %s471 = scalar_select %p470, %s17, 1
      %s472 = scalar_lea.vmem %s4, %s471
      %p473 = scmp.lt.s32.totalorder %s17, 1
      %s474 = scalar_select %p473, %s17, 1
      %s475 = scalar_lea.vmem %s5, %s474
      // Predicated region
      $region37: #{_l2sim_loss_impl.1} parent=35 // pred_check
        %p476 = pneg %p129
      $region38: #{_l2sim_loss_impl.1} parent=35 // pred_check_branch
        %478 = sbr.rel (%p476) target = $region40
      $region39: #{_l2sim_loss_impl.1} parent=35 // pred_region
        _
      $region40: #{_l2sim_loss_impl.1} parent=35 // pred_fallthru
        _
      // Predicated region
      $region41: #{_l2sim_loss_impl.1} parent=35 // pred_check
        %p479 = pneg %p155
      $region42: #{_l2sim_loss_impl.1} parent=35 // pred_check_branch
        %481 = sbr.rel (%p479) target = $region44
      $region43: #{_l2sim_loss_impl.1} parent=35 // pred_region
        _
      $region44: #{_l2sim_loss_impl.1} parent=35 // pred_fallthru
        _
    $region36: #{_l2sim_loss_impl.1} parent=5 // pred_fallthru
      _
    %p482 = scmp.le.s32.totalorder 2, %s12
    // Predicated region
    $region45: #{_l2sim_loss_impl.1} parent=5 // pred_check
      %p483 = pneg %p482
    $region46: #{_l2sim_loss_impl.1} parent=5 // pred_check_branch
      %485 = sbr.rel (%p483) target = $region48
    $region47: #{_l2sim_loss_impl.1} parent=5 // pred_region
      %s486 = ssub.s32 %s12, 2
      // Predicated region
      $region49: #{_l2sim_loss_impl.1} parent=47 // pred_check
        %p487 = pneg %p135
      $region50: #{_l2sim_loss_impl.1} parent=47 // pred_check_branch
        %489 = sbr.rel (%p487) target = $region52
      $region51: #{_l2sim_loss_impl.1} parent=47 // pred_region
        %p490 = scmp.lt.s32.totalorder %s18, 1
        %s491 = scalar_select %p490, %s18, 1
        %s492 = scalar_lea.vmem %s4, %s491
      $region52: #{_l2sim_loss_impl.1} parent=47 // pred_fallthru
        _
      // Predicated region
      $region53: #{_l2sim_loss_impl.1} parent=47 // pred_check
        %p493 = pneg %p161
      $region54: #{_l2sim_loss_impl.1} parent=47 // pred_check_branch
        %495 = sbr.rel (%p493) target = $region56
      $region55: #{_l2sim_loss_impl.1} parent=47 // pred_region
        %p496 = scmp.lt.s32.totalorder %s18, 1
        %s497 = scalar_select %p496, %s18, 1
        %s498 = scalar_lea.vmem %s5, %s497
      $region56: #{_l2sim_loss_impl.1} parent=47 // pred_fallthru
        _
    $region48: #{_l2sim_loss_impl.1} parent=5 // pred_fallthru
      _
  $region6: #{_l2sim_loss_impl.1} parent=0 // loop_footer
    %s16 = sadd.s32 1, %s12
  $region7: #{_l2sim_loss_impl.1} parent=0 // loop_footer_branch
    %11 = sbr.rel target = $region3
  $region8: #{_l2sim_loss_impl.1} parent=0 // loop_exit
    _

</llo_original>
